<compile_context>
chip_gen: v7x
topology: tpu7x:2x2x1
jax: 0.10.0
libtpu: 0.0.40
codegen_flags: <defaults>
</compile_context>

<pallas_src>
import functools

import jax
import jax.numpy as jnp
from jax import lax
from jax.experimental import pallas as pl
from jax.experimental.pallas import tpu as pltpu

BOARD_SIZE = 64
NUM_SHARDS = 3
OUT_COLS = BOARD_SIZE * NUM_SHARDS   # 192 fused classifier columns
LN_EPS = 1e-5                        # PyTorch nn.LayerNorm default


def _probe_kernel(x_ref, gamma_ref, beta_ref, w_ref, o_ref, *, start, t):
    """One batch block (bb samples) per grid step.

    x_ref:     (bb, WB, D)  residual-stream block; WB == T on the trimmed-DMA
                            fast path, WB == W on the fallback path
    gamma_ref: (T, D)       LayerNorm weight, f32 (grid-invariant)
    beta_ref:  (T, D)       LayerNorm bias, f32 (grid-invariant)
    w_ref:     (D, 192)     fused bf16 classifier weights (grid-invariant)
    o_ref:     (bb, T, 192) f32 logits
    """
    # Static window slice; a no-op when the BlockSpec already delivers only T rows.
    x = x_ref[:, start:start + t, :].astype(jnp.float32)        # (bb, T, D)
    bb, _, d = x.shape
    inv_n = 1.0 / float(t * d)

    # Two-pass LayerNorm statistics over the joint (T, D) normalized shape.
    mean = jnp.sum(x, axis=(1, 2), keepdims=True) * inv_n       # (bb, 1, 1)
    xc = x - mean
    var = jnp.sum(xc * xc, axis=(1, 2), keepdims=True) * inv_n
    inv = lax.rsqrt(var + LN_EPS)
    xn = xc * inv * gamma_ref[...] + beta_ref[...]               # (bb, T, D) f32

    # One bf16 MXU matmul (f32 accumulation) over all bb*T rows.
    # TODO(synk): when T is not sublane-aligned the (bb,T,D)->(bb*T,D) merge may
    # relayout in VMEM; this hides under the HBM-bound pipeline for this kernel.
    xn_bf = xn.astype(jnp.bfloat16).reshape(bb * t, d)
    out = jnp.dot(xn_bf, w_ref[...], preferred_element_type=jnp.float32)
    o_ref[...] = out.reshape(bb, t, OUT_COLS).astype(o_ref.dtype)


def _vmem_capacity_bytes():
    try:
        return int(pltpu.get_tpu_info().vmem_capacity_bytes)
    except Exception:
        return 64 * 1024 * 1024          # conservative fallback (v7x per-core VMEM)


@functools.partial(jax.jit, static_argnames=("window_start_trim", "window_end_trim"))
def linear_probe_forward(resid, gamma, beta, w_fused,
                         window_start_trim=0, window_end_trim=0):
    """resid:   (B, W, D) residual stream at the probed layer (f32 or bf16).
    gamma/beta: (T, D) f32 LayerNorm params, T = W - start_trim - end_trim.
    w_fused:    (D, 192) bf16 — the 3 bias-free Linear(D, 64) classifiers fused
                board-major / shard-minor.
    Returns predictions of shape (B, T, 64, 3), f32.
    """
    B, W, D = resid.shape
    T = W - window_start_trim - window_end_trim
    itemsize = jnp.dtype(resid.dtype).itemsize
    sublane = max(8, 32 // itemsize)              # f32 -> 8, bf16 -> 16

    # ---- trimmed-DMA fast path: never stream the trimmed rows from HBM ------
    if window_start_trim == 0 and (T == W or T % sublane == 0):
        wb, start_in_block = T, 0
    else:
        # TODO(synk): an Element-indexed window block would also skip the DMA of
        # the (W - T) trimmed rows when window_start_trim > 0; we keep the proven
        # full-window block + in-kernel static slice for that case.
        wb, start_in_block = W, window_start_trim

    # ---- generation-aware VMEM budgeting & batch-block sizing ---------------
    cap = _vmem_capacity_bytes()
    dual_core = cap <= 64 * 1024 * 1024           # v7x-style: 2 TCs share the grid
    budget = int(cap * 0.55)

    def _blk_bytes(b):
        inp = 2 * b * wb * D * itemsize           # double-buffered input block
        outp = 2 * b * T * OUT_COLS * 4           # double-buffered output block
        tmp = b * T * D * 10 + b * T * OUT_COLS * 4   # x, xc/xn (f32), xn_bf + f32 out tile
        return inp + outp + tmp

    resident = 2 * (2 * T * D * 4) + 2 * (D * OUT_COLS * 2)     # gamma/beta + w (dbl-buf)
    per_sample = max(1, _blk_bytes(1))
    bb = max(1, min(B, (budget - resident) // per_sample))

    if dual_core and B > 1:
        bb = min(bb, pl.cdiv(B, 2))               # >= 2 grid steps for the 2 TCs
        if pl.cdiv(B, bb) % 2 == 1:               # prefer an even step count
            for cand in range(bb, max(bb // 2, 1) - 1, -1):
                if pl.cdiv(B, cand) % 2 == 0:
                    bb = cand
                    break
    bb = max(1, min(bb, B))

    vmem_limit = int(min(int(cap * 0.9),
                         max(32 * 1024 * 1024,
                             _blk_bytes(bb) + resident + 4 * 1024 * 1024)))

    kernel = functools.partial(_probe_kernel, start=start_in_block, t=T)

    out = pl.pallas_call(
        kernel,
        out_shape=jax.ShapeDtypeStruct((B, T, OUT_COLS), jnp.float32),
        grid_spec=pltpu.PrefetchScalarGridSpec(
            num_scalar_prefetch=0,
            grid=(pl.cdiv(B, bb),),
            in_specs=[
                pl.BlockSpec((bb, wb, D), lambda b: (b, 0, 0)),
                pl.BlockSpec((T, D), lambda b: (0, 0)),
                pl.BlockSpec((T, D), lambda b: (0, 0)),
                pl.BlockSpec((D, OUT_COLS), lambda b: (0, 0)),
            ],
            out_specs=pl.BlockSpec((bb, T, OUT_COLS), lambda b: (b, 0, 0)),
        ),
        compiler_params=pltpu.CompilerParams(
            dimension_semantics=("parallel",),
            vmem_limit_bytes=vmem_limit,
        ),
    )(resid, gamma, beta, w_fused)

    # board-major / shard-minor columns -> (B, T, 64, 3), matching torch.stack(dim=3).
    return out.reshape(B, T, BOARD_SIZE, NUM_SHARDS)


def _reference(resid, gamma, beta, w_fused_bf16, start, end):
    """Pure-JAX reference (two-pass LN over joint (T, D), bf16-rounded matmul inputs)."""
    B, W, D = resid.shape
    x = resid[:, start:W - end, :].astype(jnp.float32)
    mean = jnp.mean(x, axis=(1, 2), keepdims=True)
    var = jnp.mean((x - mean) ** 2, axis=(1, 2), keepdims=True)
    xn = (x - mean) / jnp.sqrt(var + LN_EPS) * gamma + beta
    xn_bf = xn.astype(jnp.bfloat16).astype(jnp.float32)   # match kernel's bf16 MXU inputs
    out = jnp.einsum("btd,de->bte", xn_bf, w_fused_bf16.astype(jnp.float32))
    return out.reshape(B, x.shape[1], BOARD_SIZE, NUM_SHARDS)


def _make_inputs(key, B, W, D, T):
    k_x, k_w, k_g, k_b = jax.random.split(key, 4)
    # Residual-stream activations (stand-in for the frozen GPT backbone output).
    resid = jax.random.normal(k_x, (B, W, D), dtype=jnp.float32)
    # LayerNorm params over normalized_shape=(T, D); perturbed to exercise the affine.
    gamma = 1.0 + 0.1 * jax.random.normal(k_g, (T, D), dtype=jnp.float32)
    beta = 0.05 * jax.random.normal(k_b, (T, D), dtype=jnp.float32)
    # Three bias-free Linear(d_model, 64) classifiers fused into (D, 192),
    # board-major / shard-minor so reshape(..., 64, 3) matches torch.stack(dim=3).
    w_shards = jax.random.normal(k_w, (NUM_SHARDS, BOARD_SIZE, D), dtype=jnp.float32) * 0.05
    w_fused = jnp.transpose(w_shards, (2, 1, 0)).reshape(D, OUT_COLS).astype(jnp.bfloat16)
    return resid, gamma, beta, w_fused


def _run_case(key, B, W, D, start, end):
    T = W - start - end
    resid, gamma, beta, w_fused = _make_inputs(key, B, W, D, T)
    preds = linear_probe_forward(resid, gamma, beta, w_fused,
                                 window_start_trim=start, window_end_trim=end)
    preds = jax.block_until_ready(preds)
    ref = _reference(resid, gamma, beta, w_fused, start, end)
    assert preds.shape == (B, T, BOARD_SIZE, NUM_SHARDS)
    max_err = float(jnp.max(jnp.abs(preds - ref)))
    assert jnp.allclose(preds, ref, atol=3e-3, rtol=3e-3), max_err


if __name__ == "__main__":
    key = jax.random.PRNGKey(0)
    k0, k1 = jax.random.split(key)
    # batch=2, window_length=16, d_model=32, trim 2 from each end -> T=12
    # (exercises the full-window fallback path, start_trim > 0).
    _run_case(k0, B=2, W=16, D=32, start=2, end=2)
    # start_trim=0, end_trim=8 -> T=8 (exercises the trimmed-DMA fast path:
    # the 8 trimmed rows are never streamed from HBM).
    _run_case(k1, B=2, W=16, D=32, start=0, end=8)
    print("KERNEL_OK")
</pallas_src>

<mosaic_0001>
module attributes {stable_mosaic.version = 11 : i64} {
  func.func @_probe_kernel(%arg0: i32, %arg1: memref<1x16x32xf32, #tpu.memory_space<vmem>>, %arg2: memref<12x32xf32, #tpu.memory_space<vmem>>, %arg3: memref<12x32xf32, #tpu.memory_space<vmem>>, %arg4: memref<32x192xbf16, #tpu.memory_space<vmem>>, %arg5: memref<1x12x192xf32, #tpu.memory_space<vmem>>) attributes {dimension_semantics = [#tpu.dimension_semantics<parallel>], iteration_bounds = array<i64: 2>, scalar_prefetch = 0 : i64, scratch_operands = 0 : i64, tpu.core_type = #tpu.core_type<tc>, window_params = [{transform_indices = @transform_0, window_bounds = array<i64: 1, 16, 32>}, {pipeline_mode = #tpu.pipeline_mode<synchronous>, transform_indices = @transform_1, window_bounds = array<i64: 12, 32>}, {pipeline_mode = #tpu.pipeline_mode<synchronous>, transform_indices = @transform_2, window_bounds = array<i64: 12, 32>}, {pipeline_mode = #tpu.pipeline_mode<synchronous>, transform_indices = @transform_3, window_bounds = array<i64: 32, 192>}, {transform_indices = @transform_4, window_bounds = array<i64: 1, 12, 192>}]} {
    %c0 = arith.constant 0 : index
    %c2 = arith.constant 2 : index
    %c0_0 = arith.constant 0 : index
    %0 = vector.load %arg1[%c0, %c2, %c0_0] : memref<1x16x32xf32, #tpu.memory_space<vmem>>, vector<1x12x32xf32>
    %cst = arith.constant dense<0.000000e+00> : vector<1xf32>
    %1 = vector.multi_reduction <add>, %0, %cst [1, 2] : vector<1x12x32xf32> to vector<1xf32>
    %2 = vector.shape_cast %1 : vector<1xf32> to vector<1x1x1xf32>
    %cst_1 = arith.constant 0.00260416674 : f32
    %3 = vector.broadcast %cst_1 : f32 to vector<1x1x1xf32>
    %4 = arith.mulf %2, %3 : vector<1x1x1xf32>
    %5 = vector.broadcast %4 : vector<1x1x1xf32> to vector<1x12x32xf32>
    %6 = arith.subf %0, %5 : vector<1x12x32xf32>
    %7 = arith.mulf %6, %6 : vector<1x12x32xf32>
    %cst_2 = arith.constant dense<0.000000e+00> : vector<1xf32>
    %8 = vector.multi_reduction <add>, %7, %cst_2 [1, 2] : vector<1x12x32xf32> to vector<1xf32>
    %9 = vector.shape_cast %8 : vector<1xf32> to vector<1x1x1xf32>
    %cst_3 = arith.constant 0.00260416674 : f32
    %10 = vector.broadcast %cst_3 : f32 to vector<1x1x1xf32>
    %11 = arith.mulf %9, %10 : vector<1x1x1xf32>
    %cst_4 = arith.constant 9.99999974E-6 : f32
    %12 = vector.broadcast %cst_4 : f32 to vector<1x1x1xf32>
    %13 = arith.addf %11, %12 : vector<1x1x1xf32>
    %14 = math.rsqrt %13 : vector<1x1x1xf32>
    %15 = vector.broadcast %14 : vector<1x1x1xf32> to vector<1x12x32xf32>
    %16 = arith.mulf %6, %15 : vector<1x12x32xf32>
    %c0_5 = arith.constant 0 : index
    %c0_6 = arith.constant 0 : index
    %17 = vector.load %arg2[%c0_5, %c0_6] : memref<12x32xf32, #tpu.memory_space<vmem>>, vector<12x32xf32>
    %18 = vector.shape_cast %17 : vector<12x32xf32> to vector<1x12x32xf32>
    %19 = arith.mulf %16, %18 : vector<1x12x32xf32>
    %c0_7 = arith.constant 0 : index
    %c0_8 = arith.constant 0 : index
    %20 = vector.load %arg3[%c0_7, %c0_8] : memref<12x32xf32, #tpu.memory_space<vmem>>, vector<12x32xf32>
    %21 = vector.shape_cast %20 : vector<12x32xf32> to vector<1x12x32xf32>
    %22 = arith.addf %19, %21 : vector<1x12x32xf32>
    %23 = arith.truncf %22 : vector<1x12x32xf32> to vector<1x12x32xbf16>
    %24 = vector.shape_cast %23 : vector<1x12x32xbf16> to vector<12x32xbf16>
    %c0_9 = arith.constant 0 : index
    %c0_10 = arith.constant 0 : index
    %25 = vector.load %arg4[%c0_9, %c0_10] : memref<32x192xbf16, #tpu.memory_space<vmem>>, vector<32x192xbf16>
    %cst_11 = arith.constant dense<0.000000e+00> : vector<12x192xf32>
    %26 = tpu.matmul %24, %25, %cst_11 {dimension_numbers = #tpu.dot_dimension_numbers<[1], [0], [0], [1], [0, 0, 1, 1], [], []>} : vector<12x32xbf16>, vector<32x192xbf16>, vector<12x192xf32> -> vector<12x192xf32>
    %27 = vector.shape_cast %26 : vector<12x192xf32> to vector<1x12x192xf32>
    %c0_12 = arith.constant 0 : index
    %c0_13 = arith.constant 0 : index
    %c0_14 = arith.constant 0 : index
    %28 = vector.load %arg5[%c0_12, %c0_13, %c0_14] : memref<1x12x192xf32, #tpu.memory_space<vmem>>, vector<1x12x192xf32>
    tpu.vector_store %arg5[%c0_12, %c0_13, %c0_14], %27 {strides = array<i32>} : memref<1x12x192xf32, #tpu.memory_space<vmem>>, vector<1x12x192xf32>,
    return
  }
  func.func @transform_0(%arg0: i32) -> (i32, i32, i32) {
    %c0_i32 = arith.constant 0 : i32
    %c0_i32_0 = arith.constant 0 : i32
    %c0_i32_1 = arith.constant 0 : i32
    return %arg0, %c0_i32, %c0_i32_0 : i32, i32, i32
  }
  func.func @transform_1(%arg0: i32) -> (i32, i32) {
    %c0_i32 = arith.constant 0 : i32
    %c0_i32_0 = arith.constant 0 : i32
    %c0_i32_1 = arith.constant 0 : i32
    return %c0_i32, %c0_i32_0 : i32, i32
  }
  func.func @transform_2(%arg0: i32) -> (i32, i32) {
    %c0_i32 = arith.constant 0 : i32
    %c0_i32_0 = arith.constant 0 : i32
    %c0_i32_1 = arith.constant 0 : i32
    return %c0_i32, %c0_i32_0 : i32, i32
  }
  func.func @transform_3(%arg0: i32) -> (i32, i32) {
    %c0_i32 = arith.constant 0 : i32
    %c0_i32_0 = arith.constant 0 : i32
    %c0_i32_1 = arith.constant 0 : i32
    return %c0_i32, %c0_i32_0 : i32, i32
  }
  func.func @transform_4(%arg0: i32) -> (i32, i32, i32) {
    %c0_i32 = arith.constant 0 : i32
    %c0_i32_0 = arith.constant 0 : i32
    %c0_i32_1 = arith.constant 0 : i32
    return %arg0, %c0_i32, %c0_i32_0 : i32, i32, i32
  }
}

</mosaic_0001>

<llo_original>
// kernel: linear_probe_forward.1
$region0: #{linear_probe_forward.1}
  #allocation0 [shape = 'u32[]', space=smem, size = 0x4, offset = 0x4, fixed_abs, tag = 'smem constant byte address 0x4 - core index']
  #allocation1 [shape = 'u32[144,128]{1,0:T(1,128)}', space=vmem, size = 0x12000, scoped, tag = 'internal scratch']
  %s0 = inlined_call_operand.hbm [shape: f32[2,16,32], index: 0, kind: input, shape index: {}]
  %s1 = inlined_call_operand.hbm [shape: f32[12,32], index: 1, kind: input, shape index: {}]
  %s2 = inlined_call_operand.hbm [shape: f32[12,32], index: 2, kind: input, shape index: {}]
  %s3 = inlined_call_operand.hbm [shape: bf16[32,192], index: 3, kind: input, shape index: {}]
  %s4 = inlined_call_operand.vmem [shape: f32[2,12,192], index: 4, kind: output, shape index: {}]
  %s5 = sld [smem:[#allocation0]]
  $region65: #{linear_probe_forward.1} parent=0
    _
  %s7 = ssub.s32 1, %s5
  %s8 = scalar_select 0, %s7, %s5
  $region1: #{linear_probe_forward.1} parent=0
    #allocation2 [shape = 'u8[16384]{0}', space=vmem, size = 0x4000, scoped, tag = 'input window, operand 0']
    #allocation3 [shape = 's32[2]{0}', space=sflag, size = 0x8, scoped, tag = 'scoped memory for linear_probe_forward.1']
    #allocation4 [shape = 'u8[8192]{0}', space=vmem, size = 0x2000, scoped, tag = 'input window, operand 1, single buffered']
    #allocation5 [shape = 's32[1]{0}', space=sflag, size = 0x4, scoped, tag = 'scoped memory for linear_probe_forward.1']
    #allocation6 [shape = 'u8[8192]{0}', space=vmem, size = 0x2000, scoped, tag = 'input window, operand 2, single buffered']
    #allocation7 [shape = 'u8[16384]{0}', space=vmem, size = 0x4000, scoped, tag = 'input window, operand 3, single buffered']
    #allocation8 [shape = 's32[1]{0}', space=sflag, size = 0x4, scoped, tag = 'scoped memory for linear_probe_forward.1']
    %9 = vsyncpa [#allocation3], 0
    %s10 = scalar_lea.sflag [#allocation3], 1
    %11 = vsyncpa %s10, 0
    %12 = vsyncpa [#allocation5], 0
    %13 = vsyncpa [#allocation8], 0
    loop: start=0, step=1, limit=4
    $region2: #{linear_probe_forward.1} parent=1 // loop_pre_header
      _
    $region3: #{linear_probe_forward.1} parent=1 // loop_header
      %s15 = sphi 0, %s19
      %p16 = scmp.ge.s32.totalorder %s15, 4
      %s25 = sphi 0, %s27
      %s28 = sphi 0, %s25
      %s29 = sphi 0, %s28
      %s45 = sphi 0, %s29
      %s49 = sphi 0, %s49
      %s51 = sphi 0, %s49
      %s52 = sphi 0, %s51
      %s66 = sphi 0, %s52
      %s70 = sphi 0, %s70
      %s72 = sphi 0, %s70
      %s73 = sphi 0, %s72
      %s87 = sphi 0, %s73
      %s91 = sphi 0, %s91
      %s93 = sphi 0, %s91
      %s94 = sphi 0, %s93
      %s108 = sphi 0, %s94
      %s114 = sphi 0, %s116
      %s117 = sphi 0, %s114
      %s118 = sphi 0, %s117
      %s134 = sphi 0, %s118
    $region4: #{linear_probe_forward.1} parent=1 // loop_header_branch
      %18 = sbr.rel (%p16) target = $region8
    $region5: #{linear_probe_forward.1} parent=1 // loop_body
      %s20 = ssub.s32 %s15, 1
      %s21 = ssub.s32 %s15, 2
      %s22 = sadd.s32 %s15, 1
      %s23 = ssub.s32 %s15, %s22
      %p24 = scmp.eq.s32.totalorder %s23, 0
      %s26 = sadd.s32 %s25, 1
      %s27 = scalar_select %p24, %s25, %s26
      %p30 = pneg %p24
      %p31 = scmp.eq.s32.totalorder %s15, 1
      %p32 = por %p30, %p31
      %p33 = scmp.ne.s32.totalorder %s25, %s28
      %p34 = scmp.eq.s32.totalorder %s15, 0
      %p35 = por %p33, %p34
      %p36 = scmp.ne.s32.totalorder %s25, %s28
      %p37 = scmp.eq.s32.totalorder %s20, 1
      %p38 = por %p36, %p37
      %p39 = scmp.ne.s32.totalorder %s28, %s29
      %p40 = scmp.eq.s32.totalorder %s20, 0
      %p41 = por %p39, %p40
      %p42 = scmp.ne.s32.totalorder %s28, %s29
      %p43 = scmp.eq.s32.totalorder %s21, 1
      %p44 = por %p42, %p43
      %p46 = scmp.ne.s32.totalorder %s29, %s45
      %p47 = scmp.eq.s32.totalorder %s21, 0
      %p48 = por %p46, %p47
      %s50 = sadd.s32 %s49, 1
      %p53 = scmp.eq.s32.totalorder %s15, 1
      %p54 = scmp.ne.s32.totalorder %s49, %s51
      %p55 = scmp.eq.s32.totalorder %s15, 0
      %p56 = por %p54, %p55
      %p57 = scmp.ne.s32.totalorder %s49, %s51
      %p58 = scmp.eq.s32.totalorder %s20, 1
      %p59 = por %p57, %p58
      %p60 = scmp.ne.s32.totalorder %s51, %s52
      %p61 = scmp.eq.s32.totalorder %s20, 0
      %p62 = por %p60, %p61
      %p63 = scmp.ne.s32.totalorder %s51, %s52
      %p64 = scmp.eq.s32.totalorder %s21, 1
      %p65 = por %p63, %p64
      %p67 = scmp.ne.s32.totalorder %s52, %s66
      %p68 = scmp.eq.s32.totalorder %s21, 0
      %p69 = por %p67, %p68
      %s71 = sadd.s32 %s70, 1
      %p74 = scmp.eq.s32.totalorder %s15, 1
      %p75 = scmp.ne.s32.totalorder %s70, %s72
      %p76 = scmp.eq.s32.totalorder %s15, 0
      %p77 = por %p75, %p76
      %p78 = scmp.ne.s32.totalorder %s70, %s72
      %p79 = scmp.eq.s32.totalorder %s20, 1
      %p80 = por %p78, %p79
      %p81 = scmp.ne.s32.totalorder %s72, %s73
      %p82 = scmp.eq.s32.totalorder %s20, 0
      %p83 = por %p81, %p82
      %p84 = scmp.ne.s32.totalorder %s72, %s73
      %p85 = scmp.eq.s32.totalorder %s21, 1
      %p86 = por %p84, %p85
      %p88 = scmp.ne.s32.totalorder %s73, %s87
      %p89 = scmp.eq.s32.totalorder %s21, 0
      %p90 = por %p88, %p89
      %s92 = sadd.s32 %s91, 1
      %p95 = scmp.eq.s32.totalorder %s15, 1
      %p96 = scmp.ne.s32.totalorder %s91, %s93
      %p97 = scmp.eq.s32.totalorder %s15, 0
      %p98 = por %p96, %p97
      %p99 = scmp.ne.s32.totalorder %s91, %s93
      %p100 = scmp.eq.s32.totalorder %s20, 1
      %p101 = por %p99, %p100
      %p102 = scmp.ne.s32.totalorder %s93, %s94
      %p103 = scmp.eq.s32.totalorder %s20, 0
      %p104 = por %p102, %p103
      %p105 = scmp.ne.s32.totalorder %s93, %s94
      %p106 = scmp.eq.s32.totalorder %s21, 1
      %p107 = por %p105, %p106
      %p109 = scmp.ne.s32.totalorder %s94, %s108
      %p110 = scmp.eq.s32.totalorder %s21, 0
      %p111 = por %p109, %p110
      %s112 = ssub.s32 %s15, %s22
      %p113 = scmp.eq.s32.totalorder %s112, 0
      %s115 = sadd.s32 %s114, 1
      %s116 = scalar_select %p113, %s114, %s115
      %p119 = pneg %p113
      %p120 = scmp.eq.s32.totalorder %s15, 1
      %p121 = por %p119, %p120
      %p122 = scmp.ne.s32.totalorder %s114, %s117
      %p123 = scmp.eq.s32.totalorder %s15, 0
      %p124 = por %p122, %p123
      %p125 = scmp.ne.s32.totalorder %s114, %s117
      %p126 = scmp.eq.s32.totalorder %s20, 1
      %p127 = por %p125, %p126
      %p128 = scmp.ne.s32.totalorder %s117, %s118
      %p129 = scmp.eq.s32.totalorder %s20, 0
      %p130 = por %p128, %p129
      %p131 = scmp.ne.s32.totalorder %s117, %s118
      %p132 = scmp.eq.s32.totalorder %s21, 1
      %p133 = por %p131, %p132
      %p135 = scmp.ne.s32.totalorder %s118, %s134
      %p136 = scmp.eq.s32.totalorder %s21, 0
      %p137 = por %p135, %p136
      %p138 = scmp.le.s32.totalorder 1, %s15
      %p139 = scmp.lt.s32.totalorder %s15, 3
      %p140 = pnand %p138, %p139
      %p141 = pneg %p140
      // Predicated region
      $region9: #{linear_probe_forward.1} parent=5 // pred_check
        _
      $region10: #{linear_probe_forward.1} parent=5 // pred_check_branch
        %143 = sbr.rel (%p140) target = $region12
      $region11: #{linear_probe_forward.1} parent=5 // pred_region
        %s144 = ssub.s32 %s15, 1
        // Predicated region
        $region13: #{linear_probe_forward.1} parent=11 // pred_check
          %p145 = pneg %p62
        $region14: #{linear_probe_forward.1} parent=11 // pred_check_branch
          %147 = sbr.rel (%p145) target = $region16
        $region15: #{linear_probe_forward.1} parent=11 // pred_region
          %s149 = ssub.s32 256, 256
          %150 = vsyncadd [#allocation5], %s149
          %s151 = sshll.u32 [#allocation4], 4
          %s152 = int_to_ptr.vmem [resolvable:$true] %s151
          %157 = dma.hbm_to_vmem [thread:$0]  %s1, 256, %s152, [#allocation5], 128, 128, 8
        $region16: #{linear_probe_forward.1} parent=11 // pred_fallthru
          _
        // Predicated region
        $region17: #{linear_probe_forward.1} parent=11 // pred_check
          %p158 = pneg %p83
        $region18: #{linear_probe_forward.1} parent=11 // pred_check_branch
          %160 = sbr.rel (%p158) target = $region20
        $region19: #{linear_probe_forward.1} parent=11 // pred_region
          %s162 = ssub.s32 256, 256
          %163 = vsyncadd [#allocation5], %s162
          %s164 = sshll.u32 [#allocation6], 4
          %s165 = int_to_ptr.vmem [resolvable:$true] %s164
          %170 = dma.hbm_to_vmem [thread:$0]  %s2, 256, %s165, [#allocation5], 128, 128, 8
        $region20: #{linear_probe_forward.1} parent=11 // pred_fallthru
          _
        // Predicated region
        $region21: #{linear_probe_forward.1} parent=11 // pred_check
          %p171 = pneg %p104
        $region22: #{linear_probe_forward.1} parent=11 // pred_check_branch
          %173 = sbr.rel (%p171) target = $region24
        $region23: #{linear_probe_forward.1} parent=11 // pred_region
          %s175 = ssub.s32 512, 512
          %176 = vsyncadd [#allocation8], %s175
          %s177 = sshll.u32 [#allocation7], 4
          %s178 = int_to_ptr.vmem [resolvable:$true] %s177
          %183 = dma.hbm_to_vmem [thread:$0]  %s3, 512, %s178, [#allocation8], 128, 128, 8
        $region24: #{linear_probe_forward.1} parent=11 // pred_fallthru
          _
      $region12: #{linear_probe_forward.1} parent=5 // pred_fallthru
        _
      %p184 = scmp.lt.s32.totalorder %s15, 2
      // Predicated region
      $region25: #{linear_probe_forward.1} parent=5 // pred_check
        %p185 = pneg %p184
      $region26: #{linear_probe_forward.1} parent=5 // pred_check_branch
        %187 = sbr.rel (%p185) target = $region28
      $region27: #{linear_probe_forward.1} parent=5 // pred_region
        // Predicated region
        $region29: #{linear_probe_forward.1} parent=27 // pred_check
          %p188 = pneg %p35
        $region30: #{linear_probe_forward.1} parent=27 // pred_check_branch
          %190 = sbr.rel (%p188) target = $region32
        $region31: #{linear_probe_forward.1} parent=27 // pred_region
          %s191 = sand.u32 %s25, 1
          %s192 = scalar_lea.sflag [#allocation3], %s191
          %s193 = sand.u32 %s25, 1
          %s194 = smul.addr %s193, 16
          %s195 = scalar_lea.vmem [#allocation2], %s194
          %s197 = ssub.s32 256, 256
          %198 = vsyncadd %s192, %s197
          %s199 = smul.addr %s15, 2
          %s200 = smul.addr %s199, 128
          %s201 = scalar_lea.hbm %s0, %s200
          %s202 = sshll.u32 %s195, 4
          %s203 = int_to_ptr.vmem [resolvable:$true] %s202
          %208 = dma.hbm_to_vmem [thread:$0]  %s201, 256, %s203, %s192, 128, 128, 8
        $region32: #{linear_probe_forward.1} parent=27 // pred_fallthru
          _
      $region28: #{linear_probe_forward.1} parent=5 // pred_fallthru
        _
      %p209 = scmp.le.s32.totalorder 1, %s15
      %p210 = scmp.lt.s32.totalorder %s15, 3
      %p211 = pnand %p209, %p210
      %p212 = pneg %p211
      // Predicated region
      $region33: #{linear_probe_forward.1} parent=5 // pred_check
        _
      $region34: #{linear_probe_forward.1} parent=5 // pred_check_branch
        %214 = sbr.rel (%p211) target = $region36
      $region35: #{linear_probe_forward.1} parent=5 // pred_region
        %s215 = ssub.s32 %s15, 1
        %s216 = sand.u32 %s28, 1
        %s217 = scalar_lea.sflag [#allocation3], %s216
        %s218 = sand.u32 %s28, 1
        %s219 = smul.addr %s218, 16
        %s220 = scalar_lea.vmem [#allocation2], %s219
        // Predicated region
        $region37: #{linear_probe_forward.1} parent=35 // pred_check
          %p221 = pneg %p41
        $region38: #{linear_probe_forward.1} parent=35 // pred_check_branch
          %223 = sbr.rel (%p221) target = $region40
        $region39: #{linear_probe_forward.1} parent=35 // pred_region
          %224 = dma.done %s217, 256
        $region40: #{linear_probe_forward.1} parent=35 // pred_fallthru
          _
        // Predicated region
        $region41: #{linear_probe_forward.1} parent=35 // pred_check
          %p225 = pneg %p62
        $region42: #{linear_probe_forward.1} parent=35 // pred_check_branch
          %227 = sbr.rel (%p225) target = $region44
        $region43: #{linear_probe_forward.1} parent=35 // pred_region
          %228 = dma.done [#allocation5], 256
        $region44: #{linear_probe_forward.1} parent=35 // pred_fallthru
          _
        // Predicated region
        $region45: #{linear_probe_forward.1} parent=35 // pred_check
          %p229 = pneg %p83
        $region46: #{linear_probe_forward.1} parent=35 // pred_check_branch
          %231 = sbr.rel (%p229) target = $region48
        $region47: #{linear_probe_forward.1} parent=35 // pred_region
          %232 = dma.done [#allocation5], 256
        $region48: #{linear_probe_forward.1} parent=35 // pred_fallthru
          _
        // Predicated region
        $region49: #{linear_probe_forward.1} parent=35 // pred_check
          %p233 = pneg %p104
        $region50: #{linear_probe_forward.1} parent=35 // pred_check_branch
          %235 = sbr.rel (%p233) target = $region52
        $region51: #{linear_probe_forward.1} parent=35 // pred_region
          %236 = dma.done [#allocation8], 512
        $region52: #{linear_probe_forward.1} parent=35 // pred_fallthru
          _
        %s237 = sand.u32 %s28, 1
        %s238 = scalar_lea.sflag [#allocation3], %s237
        %s239 = sand.u32 %s28, 1
        %s240 = smul.addr %s239, 16
        %s241 = scalar_lea.vmem [#allocation2], %s240
        %p242 = pneg %p41
        %p243 = pneg %p38
        %p244 = pneg %p62
        %p245 = pneg %p59
        %p246 = pneg %p83
        %p247 = pneg %p80
        %p248 = pneg %p104
        %p249 = pneg %p101
        %p250 = pneg %p130
        %p251 = pneg %p127
        %p252 = scmp.lt.s32.totalorder %s20, 1
        %s253 = scalar_select %p252, %s20, 1
        %s254 = smul.addr %s253, 4
        %s255 = smul.addr %s254, 8
        %s256 = scalar_lea.vmem %s4, %s255
        %p257 = scmp.lt.s32.totalorder %s20, 1
        %s258 = scalar_select %p257, %s20, 1
        %s259 = smul.addr %s258, 4
        %s260 = smul.addr %s259, 8
        %s261 = scalar_lea.vmem %s4, %s260
        %v263 = vld [vmem:[%s220 + $0x2] sm:$0xff]
        %v264 = vld [vmem:[%s220 + $0xa] sm:$0xf]
        %vm265 = vcmask 261120
        %v266 = vsel %vm265, %v263, 0.0
        %vm267 = vcmask 257024
        %v268 = vsel %vm267, %v264, 0.0
        %v269 = vadd.f32 %v266, %v268
        %270 = vadd.xlane.f32.xlu0 %v269
        %v271 = vpop.xlane.xlu0 %270
        %v272 = vrot.slane %v271, 4
        %v273 = vadd.f32 %v271, %v272
        %v274 = vrot.slane %v273, 2
        %v275 = vadd.f32 %v273, %v274
        %v276 = vrot.slane %v275, 1
        %v277 = vadd.f32 %v275, %v276
        %v278 = vmul.f32 %v277, 0.0026041667
        %v279 = vsub.f32 %v263, %v278
        %v280 = vsub.f32 %v264, %v278
        %v281 = vmul.f32 %v279, %v279
        %v282 = vmul.f32 %v280, %v280
        %v283 = vsel %vm265, %v281, 0.0
        %v284 = vsel %vm267, %v282, 0.0
        %v285 = vadd.f32 %v283, %v284
        %286 = vadd.xlane.f32.xlu0 %v285
        %v287 = vpop.xlane.xlu0 %286
        %v288 = vrot.slane %v287, 4
        %v289 = vadd.f32 %v287, %v288
        %v290 = vrot.slane %v289, 2
        %v291 = vadd.f32 %v289, %v290
        %v292 = vrot.slane %v291, 1
        %v293 = vadd.f32 %v291, %v292
        %v294 = vmul.f32 %v293, 0.0026041667
        %v295 = vadd.f32 %v294, 1e-05
        %v296 = vrsqrt.pop %v295
        %v297 = vmul.f32 %v279, %v296
        %v298 = vmul.f32 %v280, %v296
        %v299 = vld [vmem:[#allocation4] sm:$0xff]
        %v300 = vld [vmem:[#allocation4 + $0x8] sm:$0xf]
        %v301 = vmul.f32 %v297, %v299
        %v302 = vmul.f32 %v298, %v300
        %v303 = vld [vmem:[#allocation6] sm:$0xff]
        %v304 = vld [vmem:[#allocation6 + $0x8] sm:$0xf]
        %v305 = vadd.f32 %v301, %v303
        %v306 = vadd.f32 %v302, %v304
        %v307 = vpack.c.bf16 %v306, %v305
        %v308 = vld [vmem:[#allocation7] sm:$0xff]
        %v309 = vld [vmem:[#allocation7 + $0x8] sm:$0xff]
        %v310 = vld [vmem:[#allocation7 + $0x10] sm:$0xff]
        %v311 = vld [vmem:[#allocation7 + $0x18] sm:$0xff]
        %v316 = vunpack.c.l.b16 %v308
        %v317 = vunpack.c.h.b16 %v308
        %v318 = vunpack.c.l.b16 %v309
        %v319 = vunpack.c.h.b16 %v309
        %v320 = vunpack.c.l.b16 %v310
        %v321 = vunpack.c.h.b16 %v310
        %v322 = vunpack.c.l.b16 %v311
        %v323 = vunpack.c.h.b16 %v311
        %v324 = vpack.c.b16 %v318, %v316
        %v325 = vpack.c.b16 %v319, %v317
        %v326 = vpack.c.b16 %v322, %v320
        %v327 = vpack.c.b16 %v323, %v321
        %v333 = vsel %vm265, %v307, 0
        %335 = vmatprep.subr.bf16.mxu0 %v325
        %336 = vmatpush1.bf16.msra.mxu0 %v324
        %337 = vmatprep.subr.bf16.mxu0 %v327
        %338 = vmatpush1.bf16.msra.mxu0 %v326
        %339 = vmatprep.subr.bf16.mxu0 0
        %340 = vmatpush1.bf16.msra.mxu0 0
        %341 = vmatprep.subr.bf16.mxu0 0
        %342 = vmatpush1.bf16.msra.mxu0 0
        %343 = vmatprep.subr.bf16.mxu0 0
        %344 = vmatpush1.bf16.msra.mxu0 0
        %345 = vmatprep.subr.bf16.mxu0 0
        %346 = vmatpush1.bf16.msra.mxu0 0
        %347 = vmatprep.subr.bf16.mxu0 0
        %348 = vmatpush1.bf16.msra.mxu0 0
        %349 = vmatprep.subr.bf16.mxu0 0
        %350 = vmatpush1.bf16.msra.mxu0 0
        %351 = vmatprep.subr.bf16.mxu0 0
        %352 = vmatpush1.bf16.msra.mxu0 0
        %353 = vmatprep.subr.bf16.mxu0 0
        %354 = vmatpush1.bf16.msra.mxu0 0
        %355 = vmatprep.subr.bf16.mxu0 0
        %356 = vmatpush1.bf16.msra.mxu0 0
        %357 = vmatprep.subr.bf16.mxu0 0
        %358 = vmatpush1.bf16.msra.mxu0 0
        %359 = vmatprep.subr.bf16.mxu0 0
        %360 = vmatpush1.bf16.msra.mxu0 0
        %361 = vmatprep.subr.bf16.mxu0 0
        %362 = vmatpush1.bf16.msra.mxu0 0
        %363 = vmatprep.subr.bf16.mxu0 0
        %364 = vmatpush1.bf16.msra.mxu0 0
        %365 = vmatprep.subr.bf16.mxu0 0
        %366 = vmatpush1.bf16.msra.mxu0 0
        %367 = vmatprep.mubr.bf16.mxu0 0
        %368 = vmatmul.mubr.bf16.gmra.mrb[0].mxu0 %v333
        %v369 = vpop.f32.mrb[0].mxu0
        %v370 = vadd.f32 0.0, %v369
        %v371 = vpop.f32.mrb[0].mxu0
        %v372 = vadd.f32 0.0, %v371
        %v373 = vpop.f32.mrb[0].mxu0
        %v374 = vadd.f32 0.0, %v373
        %v375 = vpop.f32.mrb[0].mxu0
        %v376 = vadd.f32 0.0, %v375
        %377 = vdwg.mxu0
        %378 = vst [vmem:[%s261] sm:$0xff] %v370
        %vm379 = vcmask 523264
        %380 = vst.msk [vmem:[%s261 + $0x8] sm:$0xff] %vm379, %v372
        %381 = vst [vmem:[%s261 + $0x10] sm:$0xf] %v374
        %vm382 = vcmask 519168
        %383 = vst.msk [vmem:[%s261 + $0x18] sm:$0xf] %vm382, %v376
        %p384 = scmp.lt.s32.totalorder %s20, 1
        %s385 = scalar_select %p384, %s20, 1
        %s386 = smul.addr %s385, 4
        %s387 = smul.addr %s386, 8
        %s388 = scalar_lea.vmem %s4, %s387
        // Predicated region
        $region53: #{linear_probe_forward.1} parent=35 // pred_check
          %p389 = pneg %p127
        $region54: #{linear_probe_forward.1} parent=35 // pred_check_branch
          %391 = sbr.rel (%p389) target = $region56
        $region55: #{linear_probe_forward.1} parent=35 // pred_region
          _
        $region56: #{linear_probe_forward.1} parent=35 // pred_fallthru
          _
      $region36: #{linear_probe_forward.1} parent=5 // pred_fallthru
        _
      %p392 = scmp.le.s32.totalorder 2, %s15
      // Predicated region
      $region57: #{linear_probe_forward.1} parent=5 // pred_check
        %p393 = pneg %p392
      $region58: #{linear_probe_forward.1} parent=5 // pred_check_branch
        %395 = sbr.rel (%p393) target = $region60
      $region59: #{linear_probe_forward.1} parent=5 // pred_region
        %s396 = ssub.s32 %s15, 2
        // Predicated region
        $region61: #{linear_probe_forward.1} parent=59 // pred_check
          %p397 = pneg %p133
        $region62: #{linear_probe_forward.1} parent=59 // pred_check_branch
          %399 = sbr.rel (%p397) target = $region64
        $region63: #{linear_probe_forward.1} parent=59 // pred_region
          %p400 = scmp.lt.s32.totalorder %s21, 1
          %s401 = scalar_select %p400, %s21, 1
          %s402 = smul.addr %s401, 4
          %s403 = smul.addr %s402, 8
          %s404 = scalar_lea.vmem %s4, %s403
        $region64: #{linear_probe_forward.1} parent=59 // pred_fallthru
          _
      $region60: #{linear_probe_forward.1} parent=5 // pred_fallthru
        _
    $region6: #{linear_probe_forward.1} parent=1 // loop_footer
      %s19 = sadd.s32 1, %s15
    $region7: #{linear_probe_forward.1} parent=1 // loop_footer_branch
      %14 = sbr.rel target = $region3
    $region8: #{linear_probe_forward.1} parent=1 // loop_exit
      _
    %405 = vsyncpa [#allocation3], 1
    %s406 = scalar_lea.sflag [#allocation3], 1
    %407 = vsyncpa %s406, 1
    %408 = vsyncpa [#allocation5], 1
    %409 = vsyncpa [#allocation8], 1

</llo_original>
